<compile_context>
chip_gen: v5e
topology: v5e:2x2
jax: 0.10.0
libtpu: 0.0.40
codegen_flags: <defaults>
</compile_context>

<pallas_src>
import functools

import jax
import jax.numpy as jnp
from jax.experimental import pallas as pl
from jax.experimental.pallas import tpu as pltpu

_LANE = 128
_SUBLANE = 8


def _round_up(x, m):
    return ((x + m - 1) // m) * m


def _choose_block_m(batch, block_m_max):
    """Pick a batch tile: big (amortize ~600-cycle/step overhead), sublane
    aligned, and >= 2 grid steps when possible (v7x has 2 TensorCores)."""
    b8 = _round_up(batch, _SUBLANE)
    bm = min(block_m_max, b8)
    if b8 // bm < 2 and b8 >= 2 * _SUBLANE:
        bm = _round_up(pl.cdiv(b8, 2), _SUBLANE)
    batch_p = _round_up(b8, bm)
    return bm, batch_p


def _make_mlp_kernel(num_linear, compute_dtype):
    """Fused MLP: num_linear Linear layers, ReLU between consecutive layers."""

    def kernel(x_ref, *refs):
        o_ref = refs[-1]
        wb = refs[:-1]  # alternating (w, b) refs
        h = x_ref[...]
        for li in range(num_linear):
            w = wb[2 * li][...]
            b = wb[2 * li + 1][...]          # (1, out_p) f32, broadcasts over rows
            h = jnp.dot(h.astype(compute_dtype), w,
                        preferred_element_type=jnp.float32) + b
            if li < num_linear - 1:
                h = jnp.maximum(h, 0.0)
        o_ref[...] = h.astype(o_ref.dtype)

    return kernel


@functools.partial(jax.jit, static_argnames=("block_m_max", "compute_dtype"))
def mlp_forward(x, params, *, block_m_max=512, compute_dtype=jnp.float32):
    """Fused MLP forward.

    x:      (batch, n_inputs) float32
    params: tuple of (w, b) per Linear layer, w: (in_dim, out_dim), b: (out_dim,)
            (w is the transpose of torch nn.Linear.weight, so y = x @ w + b)
    """
    batch, n_in = x.shape
    n_linear = len(params)
    widths = [n_in] + [w.shape[1] for (w, _) in params]
    padded = [_round_up(d, _LANE) for d in widths]          # lane-dense dims

    block_m, batch_p = _choose_block_m(batch, block_m_max)
    grid = (batch_p // block_m,)

    itemsize = jnp.dtype(compute_dtype).itemsize

    # --- zero-pad inputs / params to lane-aligned shapes (exact, see header) ---
    x_p = jnp.zeros((batch_p, padded[0]), compute_dtype)
    x_p = x_p.at[:batch, :n_in].set(x.astype(compute_dtype))

    flat_params = []
    for li, (w, b) in enumerate(params):
        din, dout = w.shape
        w_p = jnp.zeros((padded[li], padded[li + 1]), compute_dtype)
        w_p = w_p.at[:din, :dout].set(w.astype(compute_dtype))
        b_p = jnp.zeros((1, padded[li + 1]), jnp.float32)
        b_p = b_p.at[0, :dout].set(b.reshape(-1).astype(jnp.float32))
        flat_params.extend([w_p, b_p])

    # --- BlockSpecs ---
    def const_spec(shape):
        # Constant index_map -> same block every grid step; the pipeline keeps
        # it resident in VMEM (no per-step re-DMA).
        return pl.BlockSpec(shape, lambda i: (0, 0))

    in_specs = [pl.BlockSpec((block_m, padded[0]), lambda i: (i, 0))]
    for li in range(n_linear):
        in_specs.append(const_spec((padded[li], padded[li + 1])))   # W_li
        in_specs.append(const_spec((1, padded[li + 1])))            # b_li
    out_spec = pl.BlockSpec((block_m, padded[-1]), lambda i: (i, 0))

    # --- cost estimate (advisory) ---
    flops = 2 * batch_p * sum(padded[i] * padded[i + 1] for i in range(n_linear))
    weight_bytes = sum(padded[i] * padded[i + 1] * itemsize + padded[i + 1] * 4
                       for i in range(n_linear))
    bytes_accessed = (batch_p * padded[0] * itemsize
                      + weight_bytes
                      + batch_p * padded[-1] * 4)
    cost = pl.CostEstimate(flops=flops, transcendentals=0,
                           bytes_accessed=bytes_accessed)

    # --- explicit VMEM budget (clamped to 64 MiB: safe on v7x as well) ---
    act_bytes = block_m * max(padded) * 4
    vmem_needed = (2 * block_m * padded[0] * itemsize    # x tile, double-buffered
                   + 2 * block_m * padded[-1] * 4        # out tile, double-buffered
                   + 2 * weight_bytes                    # weights/biases (double-buf)
                   + 6 * act_bytes                       # intermediate slabs + slack
                   + (4 << 20))
    vmem_limit = int(min(max(vmem_needed, 32 << 20), 64 << 20))

    out_p = pl.pallas_call(
        _make_mlp_kernel(n_linear, compute_dtype),
        out_shape=jax.ShapeDtypeStruct((batch_p, padded[-1]), jnp.float32),
        grid=grid,
        in_specs=in_specs,
        out_specs=out_spec,
        compiler_params=pltpu.CompilerParams(
            dimension_semantics=("parallel",),
            vmem_limit_bytes=vmem_limit,
        ),
        cost_estimate=cost,
    )(x_p, *flat_params)

    # Strip batch / output-lane padding.
    return out_p[:batch, :widths[-1]]


def init_mlp_params(key, n_inputs, n_outputs, n_units, n_layers=1):
    """Mimics nn.Linear's uniform fan-in init. Returns ((w, b), ...) with
    w stored as (in_dim, out_dim)."""
    dims = [n_inputs] + [n_units] * (n_layers + 1) + [n_outputs]
    keys = jax.random.split(key, 2 * (len(dims) - 1))
    params = []
    for i in range(len(dims) - 1):
        fan_in, fan_out = dims[i], dims[i + 1]
        bound = 1.0 / (fan_in ** 0.5)
        w = jax.random.uniform(keys[2 * i], (fan_in, fan_out), jnp.float32,
                               -bound, bound)
        b = jax.random.uniform(keys[2 * i + 1], (fan_out,), jnp.float32,
                               -bound, bound)
        params.append((w, b))
    return tuple(params)


def mlp_reference(x, params):
    h = x
    for i, (w, b) in enumerate(params):
        h = h @ w + b
        if i < len(params) - 1:
            h = jnp.maximum(h, 0.0)
    return h


if __name__ == "__main__":
    # Shapes consistent with MLP(n_inputs=4, n_outputs=2, n_layers=1, n_units=32)
    batch, n_inputs, n_outputs, n_units, n_layers = 64, 4, 2, 32, 1

    key = jax.random.PRNGKey(0)
    kx, kp = jax.random.split(key)
    x = jax.random.normal(kx, (batch, n_inputs), dtype=jnp.float32)
    params = init_mlp_params(kp, n_inputs, n_outputs, n_units, n_layers=n_layers)

    out = mlp_forward(x, params)
    out = jax.block_until_ready(out)

    ref = mlp_reference(x, params)
    assert out.shape == (batch, n_outputs)
    assert jnp.allclose(out, ref, atol=1e-5, rtol=1e-5), "mismatch vs reference"

    print("KERNEL_OK")
</pallas_src>

<mosaic_0001>
module attributes {stable_mosaic.version = 11 : i64} {
  func.func @kernel(%arg0: i32, %arg1: memref<32x128xf32, #tpu.memory_space<vmem>>, %arg2: memref<128x128xf32, #tpu.memory_space<vmem>>, %arg3: memref<1x128xf32, #tpu.memory_space<vmem>>, %arg4: memref<128x128xf32, #tpu.memory_space<vmem>>, %arg5: memref<1x128xf32, #tpu.memory_space<vmem>>, %arg6: memref<128x128xf32, #tpu.memory_space<vmem>>, %arg7: memref<1x128xf32, #tpu.memory_space<vmem>>, %arg8: memref<32x128xf32, #tpu.memory_space<vmem>>) attributes {dimension_semantics = [#tpu.dimension_semantics<parallel>], iteration_bounds = array<i64: 2>, scalar_prefetch = 0 : i64, scratch_operands = 0 : i64, tpu.core_type = #tpu.core_type<tc>, window_params = [{transform_indices = @transform_0, window_bounds = array<i64: 32, 128>}, {pipeline_mode = #tpu.pipeline_mode<synchronous>, transform_indices = @transform_1, window_bounds = array<i64: 128, 128>}, {pipeline_mode = #tpu.pipeline_mode<synchronous>, transform_indices = @transform_2, window_bounds = array<i64: 1, 128>}, {pipeline_mode = #tpu.pipeline_mode<synchronous>, transform_indices = @transform_3, window_bounds = array<i64: 128, 128>}, {pipeline_mode = #tpu.pipeline_mode<synchronous>, transform_indices = @transform_4, window_bounds = array<i64: 1, 128>}, {pipeline_mode = #tpu.pipeline_mode<synchronous>, transform_indices = @transform_5, window_bounds = array<i64: 128, 128>}, {pipeline_mode = #tpu.pipeline_mode<synchronous>, transform_indices = @transform_6, window_bounds = array<i64: 1, 128>}, {transform_indices = @transform_7, window_bounds = array<i64: 32, 128>}]} {
    %c0 = arith.constant 0 : index
    %c0_0 = arith.constant 0 : index
    %0 = vector.load %arg1[%c0, %c0_0] : memref<32x128xf32, #tpu.memory_space<vmem>>, vector<32x128xf32>
    %c0_1 = arith.constant 0 : index
    %c0_2 = arith.constant 0 : index
    %1 = vector.load %arg2[%c0_1, %c0_2] : memref<128x128xf32, #tpu.memory_space<vmem>>, vector<128x128xf32>
    %c0_3 = arith.constant 0 : index
    %c0_4 = arith.constant 0 : index
    %2 = vector.load %arg3[%c0_3, %c0_4] : memref<1x128xf32, #tpu.memory_space<vmem>>, vector<1x128xf32>
    %cst = arith.constant dense<0.000000e+00> : vector<32x128xf32>
    %3 = tpu.matmul %0, %1, %cst {dimension_numbers = #tpu.dot_dimension_numbers<[1], [0], [0], [1], [0, 0, 1, 1], [], []>} : vector<32x128xf32>, vector<128x128xf32>, vector<32x128xf32> -> vector<32x128xf32>
    %4 = vector.broadcast %2 : vector<1x128xf32> to vector<32x128xf32>
    %5 = arith.addf %3, %4 : vector<32x128xf32>
    %cst_5 = arith.constant 0.000000e+00 : f32
    %6 = vector.broadcast %cst_5 : f32 to vector<32x128xf32>
    %7 = arith.maximumf %5, %6 : vector<32x128xf32>
    %c0_6 = arith.constant 0 : index
    %c0_7 = arith.constant 0 : index
    %8 = vector.load %arg4[%c0_6, %c0_7] : memref<128x128xf32, #tpu.memory_space<vmem>>, vector<128x128xf32>
    %c0_8 = arith.constant 0 : index
    %c0_9 = arith.constant 0 : index
    %9 = vector.load %arg5[%c0_8, %c0_9] : memref<1x128xf32, #tpu.memory_space<vmem>>, vector<1x128xf32>
    %cst_10 = arith.constant dense<0.000000e+00> : vector<32x128xf32>
    %10 = tpu.matmul %7, %8, %cst_10 {dimension_numbers = #tpu.dot_dimension_numbers<[1], [0], [0], [1], [0, 0, 1, 1], [], []>} : vector<32x128xf32>, vector<128x128xf32>, vector<32x128xf32> -> vector<32x128xf32>
    %11 = vector.broadcast %9 : vector<1x128xf32> to vector<32x128xf32>
    %12 = arith.addf %10, %11 : vector<32x128xf32>
    %cst_11 = arith.constant 0.000000e+00 : f32
    %13 = vector.broadcast %cst_11 : f32 to vector<32x128xf32>
    %14 = arith.maximumf %12, %13 : vector<32x128xf32>
    %c0_12 = arith.constant 0 : index
    %c0_13 = arith.constant 0 : index
    %15 = vector.load %arg6[%c0_12, %c0_13] : memref<128x128xf32, #tpu.memory_space<vmem>>, vector<128x128xf32>
    %c0_14 = arith.constant 0 : index
    %c0_15 = arith.constant 0 : index
    %16 = vector.load %arg7[%c0_14, %c0_15] : memref<1x128xf32, #tpu.memory_space<vmem>>, vector<1x128xf32>
    %cst_16 = arith.constant dense<0.000000e+00> : vector<32x128xf32>
    %17 = tpu.matmul %14, %15, %cst_16 {dimension_numbers = #tpu.dot_dimension_numbers<[1], [0], [0], [1], [0, 0, 1, 1], [], []>} : vector<32x128xf32>, vector<128x128xf32>, vector<32x128xf32> -> vector<32x128xf32>
    %18 = vector.broadcast %16 : vector<1x128xf32> to vector<32x128xf32>
    %19 = arith.addf %17, %18 : vector<32x128xf32>
    %c0_17 = arith.constant 0 : index
    %c0_18 = arith.constant 0 : index
    %20 = vector.load %arg8[%c0_17, %c0_18] : memref<32x128xf32, #tpu.memory_space<vmem>>, vector<32x128xf32>
    tpu.vector_store %arg8[%c0_17, %c0_18], %19 {strides = array<i32>} : memref<32x128xf32, #tpu.memory_space<vmem>>, vector<32x128xf32>,
    return
  }
  func.func @transform_0(%arg0: i32) -> (i32, i32) {
    %c0_i32 = arith.constant 0 : i32
    %c0_i32_0 = arith.constant 0 : i32
    return %arg0, %c0_i32 : i32, i32
  }
  func.func @transform_1(%arg0: i32) -> (i32, i32) {
    %c0_i32 = arith.constant 0 : i32
    %c0_i32_0 = arith.constant 0 : i32
    %c0_i32_1 = arith.constant 0 : i32
    return %c0_i32, %c0_i32_0 : i32, i32
  }
  func.func @transform_2(%arg0: i32) -> (i32, i32) {
    %c0_i32 = arith.constant 0 : i32
    %c0_i32_0 = arith.constant 0 : i32
    %c0_i32_1 = arith.constant 0 : i32
    return %c0_i32, %c0_i32_0 : i32, i32
  }
  func.func @transform_3(%arg0: i32) -> (i32, i32) {
    %c0_i32 = arith.constant 0 : i32
    %c0_i32_0 = arith.constant 0 : i32
    %c0_i32_1 = arith.constant 0 : i32
    return %c0_i32, %c0_i32_0 : i32, i32
  }
  func.func @transform_4(%arg0: i32) -> (i32, i32) {
    %c0_i32 = arith.constant 0 : i32
    %c0_i32_0 = arith.constant 0 : i32
    %c0_i32_1 = arith.constant 0 : i32
    return %c0_i32, %c0_i32_0 : i32, i32
  }
  func.func @transform_5(%arg0: i32) -> (i32, i32) {
    %c0_i32 = arith.constant 0 : i32
    %c0_i32_0 = arith.constant 0 : i32
    %c0_i32_1 = arith.constant 0 : i32
    return %c0_i32, %c0_i32_0 : i32, i32
  }
  func.func @transform_6(%arg0: i32) -> (i32, i32) {
    %c0_i32 = arith.constant 0 : i32
    %c0_i32_0 = arith.constant 0 : i32
    %c0_i32_1 = arith.constant 0 : i32
    return %c0_i32, %c0_i32_0 : i32, i32
  }
  func.func @transform_7(%arg0: i32) -> (i32, i32) {
    %c0_i32 = arith.constant 0 : i32
    %c0_i32_0 = arith.constant 0 : i32
    return %arg0, %c0_i32 : i32, i32
  }
}

</mosaic_0001>

<llo_original>
// kernel: mlp_forward.1
$region0: #{mlp_forward.1}
  #allocation0 [shape = 'u32[]', space=smem, size = 0x4, offset = 0x4, fixed_abs, tag = 'smem constant byte address 0x4 - core index']
  #allocation1 [shape = 'u32[72,128]{1,0:T(1,128)}', space=vmem, size = 0x9000, scoped, tag = 'internal scratch']
  %s0 = inlined_call_operand.vmem [shape: f32[64,128], index: 0, kind: input, shape index: {}]
  %s1 = inlined_call_operand.vmem [shape: f32[128,128], index: 1, kind: input, shape index: {}]
  %s2 = inlined_call_operand.vmem [shape: f32[1,128], index: 2, kind: input, shape index: {}]
  %s3 = inlined_call_operand.vmem [shape: f32[128,128], index: 3, kind: input, shape index: {}]
  %s4 = inlined_call_operand.vmem [shape: f32[1,128], index: 4, kind: input, shape index: {}]
  %s5 = inlined_call_operand.vmem [shape: f32[128,128], index: 5, kind: input, shape index: {}]
  %s6 = inlined_call_operand.vmem [shape: f32[1,128], index: 6, kind: input, shape index: {}]
  %s7 = inlined_call_operand.vmem [shape: f32[64,128], index: 7, kind: output, shape index: {}]
  %s8 = sld [smem:[#allocation0]]
  $region61: #{mlp_forward.1} parent=0
    _
  %s10 = ssub.s32 1, %s8
  %s11 = scalar_select 0, %s10, %s8
  loop: start=0, step=1, limit=4
  $region2: #{mlp_forward.1} parent=0 // loop_pre_header
    _
  $region3: #{mlp_forward.1} parent=0 // loop_header
    %s13 = sphi 0, %s17
    %p14 = scmp.ge.s32.totalorder %s13, 4
    %s23 = sphi 0, %s25
    %s26 = sphi 0, %s23
    %s27 = sphi 0, %s26
    %s43 = sphi 0, %s27
    %s47 = sphi 0, %s47
    %s49 = sphi 0, %s47
    %s50 = sphi 0, %s49
    %s64 = sphi 0, %s50
    %s68 = sphi 0, %s68
    %s70 = sphi 0, %s68
    %s71 = sphi 0, %s70
    %s85 = sphi 0, %s71
    %s89 = sphi 0, %s89
    %s91 = sphi 0, %s89
    %s92 = sphi 0, %s91
    %s106 = sphi 0, %s92
    %s110 = sphi 0, %s110
    %s112 = sphi 0, %s110
    %s113 = sphi 0, %s112
    %s127 = sphi 0, %s113
    %s131 = sphi 0, %s131
    %s133 = sphi 0, %s131
    %s134 = sphi 0, %s133
    %s148 = sphi 0, %s134
    %s152 = sphi 0, %s152
    %s154 = sphi 0, %s152
    %s155 = sphi 0, %s154
    %s169 = sphi 0, %s155
    %s175 = sphi 0, %s177
    %s178 = sphi 0, %s175
    %s179 = sphi 0, %s178
    %s195 = sphi 0, %s179
  $region4: #{mlp_forward.1} parent=0 // loop_header_branch
    %16 = sbr.rel (%p14) target = $region8
  $region5: #{mlp_forward.1} parent=0 // loop_body
    %s18 = ssub.s32 %s13, 1
    %s19 = ssub.s32 %s13, 2
    %s20 = sadd.s32 %s13, 1
    %s21 = ssub.s32 %s13, %s20
    %p22 = scmp.eq.s32.totalorder %s21, 0
    %s24 = sadd.s32 %s23, 1
    %s25 = scalar_select %p22, %s23, %s24
    %p28 = pneg %p22
    %p29 = scmp.eq.s32.totalorder %s13, 1
    %p30 = por %p28, %p29
    %p31 = scmp.ne.s32.totalorder %s23, %s26
    %p32 = scmp.eq.s32.totalorder %s13, 0
    %p33 = por %p31, %p32
    %p34 = scmp.ne.s32.totalorder %s23, %s26
    %p35 = scmp.eq.s32.totalorder %s18, 1
    %p36 = por %p34, %p35
    %p37 = scmp.ne.s32.totalorder %s26, %s27
    %p38 = scmp.eq.s32.totalorder %s18, 0
    %p39 = por %p37, %p38
    %p40 = scmp.ne.s32.totalorder %s26, %s27
    %p41 = scmp.eq.s32.totalorder %s19, 1
    %p42 = por %p40, %p41
    %p44 = scmp.ne.s32.totalorder %s27, %s43
    %p45 = scmp.eq.s32.totalorder %s19, 0
    %p46 = por %p44, %p45
    %s48 = sadd.s32 %s47, 1
    %p51 = scmp.eq.s32.totalorder %s13, 1
    %p52 = scmp.ne.s32.totalorder %s47, %s49
    %p53 = scmp.eq.s32.totalorder %s13, 0
    %p54 = por %p52, %p53
    %p55 = scmp.ne.s32.totalorder %s47, %s49
    %p56 = scmp.eq.s32.totalorder %s18, 1
    %p57 = por %p55, %p56
    %p58 = scmp.ne.s32.totalorder %s49, %s50
    %p59 = scmp.eq.s32.totalorder %s18, 0
    %p60 = por %p58, %p59
    %p61 = scmp.ne.s32.totalorder %s49, %s50
    %p62 = scmp.eq.s32.totalorder %s19, 1
    %p63 = por %p61, %p62
    %p65 = scmp.ne.s32.totalorder %s50, %s64
    %p66 = scmp.eq.s32.totalorder %s19, 0
    %p67 = por %p65, %p66
    %s69 = sadd.s32 %s68, 1
    %p72 = scmp.eq.s32.totalorder %s13, 1
    %p73 = scmp.ne.s32.totalorder %s68, %s70
    %p74 = scmp.eq.s32.totalorder %s13, 0
    %p75 = por %p73, %p74
    %p76 = scmp.ne.s32.totalorder %s68, %s70
    %p77 = scmp.eq.s32.totalorder %s18, 1
    %p78 = por %p76, %p77
    %p79 = scmp.ne.s32.totalorder %s70, %s71
    %p80 = scmp.eq.s32.totalorder %s18, 0
    %p81 = por %p79, %p80
    %p82 = scmp.ne.s32.totalorder %s70, %s71
    %p83 = scmp.eq.s32.totalorder %s19, 1
    %p84 = por %p82, %p83
    %p86 = scmp.ne.s32.totalorder %s71, %s85
    %p87 = scmp.eq.s32.totalorder %s19, 0
    %p88 = por %p86, %p87
    %s90 = sadd.s32 %s89, 1
    %p93 = scmp.eq.s32.totalorder %s13, 1
    %p94 = scmp.ne.s32.totalorder %s89, %s91
    %p95 = scmp.eq.s32.totalorder %s13, 0
    %p96 = por %p94, %p95
    %p97 = scmp.ne.s32.totalorder %s89, %s91
    %p98 = scmp.eq.s32.totalorder %s18, 1
    %p99 = por %p97, %p98
    %p100 = scmp.ne.s32.totalorder %s91, %s92
    %p101 = scmp.eq.s32.totalorder %s18, 0
    %p102 = por %p100, %p101
    %p103 = scmp.ne.s32.totalorder %s91, %s92
    %p104 = scmp.eq.s32.totalorder %s19, 1
    %p105 = por %p103, %p104
    %p107 = scmp.ne.s32.totalorder %s92, %s106
    %p108 = scmp.eq.s32.totalorder %s19, 0
    %p109 = por %p107, %p108
    %s111 = sadd.s32 %s110, 1
    %p114 = scmp.eq.s32.totalorder %s13, 1
    %p115 = scmp.ne.s32.totalorder %s110, %s112
    %p116 = scmp.eq.s32.totalorder %s13, 0
    %p117 = por %p115, %p116
    %p118 = scmp.ne.s32.totalorder %s110, %s112
    %p119 = scmp.eq.s32.totalorder %s18, 1
    %p120 = por %p118, %p119
    %p121 = scmp.ne.s32.totalorder %s112, %s113
    %p122 = scmp.eq.s32.totalorder %s18, 0
    %p123 = por %p121, %p122
    %p124 = scmp.ne.s32.totalorder %s112, %s113
    %p125 = scmp.eq.s32.totalorder %s19, 1
    %p126 = por %p124, %p125
    %p128 = scmp.ne.s32.totalorder %s113, %s127
    %p129 = scmp.eq.s32.totalorder %s19, 0
    %p130 = por %p128, %p129
    %s132 = sadd.s32 %s131, 1
    %p135 = scmp.eq.s32.totalorder %s13, 1
    %p136 = scmp.ne.s32.totalorder %s131, %s133
    %p137 = scmp.eq.s32.totalorder %s13, 0
    %p138 = por %p136, %p137
    %p139 = scmp.ne.s32.totalorder %s131, %s133
    %p140 = scmp.eq.s32.totalorder %s18, 1
    %p141 = por %p139, %p140
    %p142 = scmp.ne.s32.totalorder %s133, %s134
    %p143 = scmp.eq.s32.totalorder %s18, 0
    %p144 = por %p142, %p143
    %p145 = scmp.ne.s32.totalorder %s133, %s134
    %p146 = scmp.eq.s32.totalorder %s19, 1
    %p147 = por %p145, %p146
    %p149 = scmp.ne.s32.totalorder %s134, %s148
    %p150 = scmp.eq.s32.totalorder %s19, 0
    %p151 = por %p149, %p150
    %s153 = sadd.s32 %s152, 1
    %p156 = scmp.eq.s32.totalorder %s13, 1
    %p157 = scmp.ne.s32.totalorder %s152, %s154
    %p158 = scmp.eq.s32.totalorder %s13, 0
    %p159 = por %p157, %p158
    %p160 = scmp.ne.s32.totalorder %s152, %s154
    %p161 = scmp.eq.s32.totalorder %s18, 1
    %p162 = por %p160, %p161
    %p163 = scmp.ne.s32.totalorder %s154, %s155
    %p164 = scmp.eq.s32.totalorder %s18, 0
    %p165 = por %p163, %p164
    %p166 = scmp.ne.s32.totalorder %s154, %s155
    %p167 = scmp.eq.s32.totalorder %s19, 1
    %p168 = por %p166, %p167
    %p170 = scmp.ne.s32.totalorder %s155, %s169
    %p171 = scmp.eq.s32.totalorder %s19, 0
    %p172 = por %p170, %p171
    %s173 = ssub.s32 %s13, %s20
    %p174 = scmp.eq.s32.totalorder %s173, 0
    %s176 = sadd.s32 %s175, 1
    %s177 = scalar_select %p174, %s175, %s176
    %p180 = pneg %p174
    %p181 = scmp.eq.s32.totalorder %s13, 1
    %p182 = por %p180, %p181
    %p183 = scmp.ne.s32.totalorder %s175, %s178
    %p184 = scmp.eq.s32.totalorder %s13, 0
    %p185 = por %p183, %p184
    %p186 = scmp.ne.s32.totalorder %s175, %s178
    %p187 = scmp.eq.s32.totalorder %s18, 1
    %p188 = por %p186, %p187
    %p189 = scmp.ne.s32.totalorder %s178, %s179
    %p190 = scmp.eq.s32.totalorder %s18, 0
    %p191 = por %p189, %p190
    %p192 = scmp.ne.s32.totalorder %s178, %s179
    %p193 = scmp.eq.s32.totalorder %s19, 1
    %p194 = por %p192, %p193
    %p196 = scmp.ne.s32.totalorder %s179, %s195
    %p197 = scmp.eq.s32.totalorder %s19, 0
    %p198 = por %p196, %p197
    %p199 = scmp.le.s32.totalorder 1, %s13
    %p200 = scmp.lt.s32.totalorder %s13, 3
    %p201 = pnand %p199, %p200
    %p202 = pneg %p201
    // Predicated region
    $region9: #{mlp_forward.1} parent=5 // pred_check
      _
    $region10: #{mlp_forward.1} parent=5 // pred_check_branch
      %204 = sbr.rel (%p201) target = $region12
    $region11: #{mlp_forward.1} parent=5 // pred_region
      %s205 = ssub.s32 %s13, 1
      // Predicated region
      $region13: #{mlp_forward.1} parent=11 // pred_check
        %p206 = pneg %p60
      $region14: #{mlp_forward.1} parent=11 // pred_check_branch
        %208 = sbr.rel (%p206) target = $region16
      $region15: #{mlp_forward.1} parent=11 // pred_region
        _
      $region16: #{mlp_forward.1} parent=11 // pred_fallthru
        _
      // Predicated region
      $region17: #{mlp_forward.1} parent=11 // pred_check
        %p209 = pneg %p81
      $region18: #{mlp_forward.1} parent=11 // pred_check_branch
        %211 = sbr.rel (%p209) target = $region20
      $region19: #{mlp_forward.1} parent=11 // pred_region
        _
      $region20: #{mlp_forward.1} parent=11 // pred_fallthru
        _
      // Predicated region
      $region21: #{mlp_forward.1} parent=11 // pred_check
        %p212 = pneg %p102
      $region22: #{mlp_forward.1} parent=11 // pred_check_branch
        %214 = sbr.rel (%p212) target = $region24
      $region23: #{mlp_forward.1} parent=11 // pred_region
        _
      $region24: #{mlp_forward.1} parent=11 // pred_fallthru
        _
      // Predicated region
      $region25: #{mlp_forward.1} parent=11 // pred_check
        %p215 = pneg %p123
      $region26: #{mlp_forward.1} parent=11 // pred_check_branch
        %217 = sbr.rel (%p215) target = $region28
      $region27: #{mlp_forward.1} parent=11 // pred_region
        _
      $region28: #{mlp_forward.1} parent=11 // pred_fallthru
        _
      // Predicated region
      $region29: #{mlp_forward.1} parent=11 // pred_check
        %p218 = pneg %p144
      $region30: #{mlp_forward.1} parent=11 // pred_check_branch
        %220 = sbr.rel (%p218) target = $region32
      $region31: #{mlp_forward.1} parent=11 // pred_region
        _
      $region32: #{mlp_forward.1} parent=11 // pred_fallthru
        _
      // Predicated region
      $region33: #{mlp_forward.1} parent=11 // pred_check
        %p221 = pneg %p165
      $region34: #{mlp_forward.1} parent=11 // pred_check_branch
        %223 = sbr.rel (%p221) target = $region36
      $region35: #{mlp_forward.1} parent=11 // pred_region
        _
      $region36: #{mlp_forward.1} parent=11 // pred_fallthru
        _
    $region12: #{mlp_forward.1} parent=5 // pred_fallthru
      _
    %p224 = scmp.lt.s32.totalorder %s13, 2
    // Predicated region
    $region37: #{mlp_forward.1} parent=5 // pred_check
      %p225 = pneg %p224
    $region38: #{mlp_forward.1} parent=5 // pred_check_branch
      %227 = sbr.rel (%p225) target = $region40
    $region39: #{mlp_forward.1} parent=5 // pred_region
      // Predicated region
      $region41: #{mlp_forward.1} parent=39 // pred_check
        %p228 = pneg %p33
      $region42: #{mlp_forward.1} parent=39 // pred_check_branch
        %230 = sbr.rel (%p228) target = $region44
      $region43: #{mlp_forward.1} parent=39 // pred_region
        %s231 = smul.u32 4, %s13
        %p232 = scmp.lt.s32.totalorder %s231, 7
        %s233 = scalar_select %p232, %s231, 7
        %s234 = smul.addr %s233, 8
        %s235 = scalar_lea.vmem %s0, %s234
        %s236 = smul.u32 4, %s13
      $region44: #{mlp_forward.1} parent=39 // pred_fallthru
        _
    $region40: #{mlp_forward.1} parent=5 // pred_fallthru
      _
    %p237 = scmp.le.s32.totalorder 1, %s13
    %p238 = scmp.lt.s32.totalorder %s13, 3
    %p239 = pnand %p237, %p238
    %p240 = pneg %p239
    // Predicated region
    $region45: #{mlp_forward.1} parent=5 // pred_check
      _
    $region46: #{mlp_forward.1} parent=5 // pred_check_branch
      %242 = sbr.rel (%p239) target = $region48
    $region47: #{mlp_forward.1} parent=5 // pred_region
      %s243 = ssub.s32 %s13, 1
      %s244 = smul.u32 4, %s18
      %p245 = scmp.lt.s32.totalorder %s244, 7
      %s246 = scalar_select %p245, %s244, 7
      %s247 = smul.addr %s246, 8
      %s248 = scalar_lea.vmem %s0, %s247
      %p249 = pneg %p39
      %p250 = pneg %p36
      %p251 = pneg %p60
      %p252 = pneg %p57
      %p253 = pneg %p81
      %p254 = pneg %p78
      %p255 = pneg %p102
      %p256 = pneg %p99
      %p257 = pneg %p123
      %p258 = pneg %p120
      %p259 = pneg %p144
      %p260 = pneg %p141
      %p261 = pneg %p165
      %p262 = pneg %p162
      %p263 = pneg %p191
      %p264 = pneg %p188
      %s265 = smul.u32 4, %s18
      %p266 = scmp.lt.s32.totalorder %s265, 7
      %s267 = scalar_select %p266, %s265, 7
      %s268 = smul.addr %s267, 8
      %s269 = scalar_lea.vmem %s7, %s268
      %s270 = smul.u32 4, %s18
      %p271 = scmp.lt.s32.totalorder %s270, 7
      %s272 = scalar_select %p271, %s270, 7
      %s273 = smul.addr %s272, 8
      %s274 = scalar_lea.vmem %s0, %s273
      %s275 = smul.u32 4, %s18
      %s276 = smul.u32 4, %s18
      %p277 = scmp.lt.s32.totalorder %s276, 7
      %s278 = scalar_select %p277, %s276, 7
      %s279 = smul.addr %s278, 8
      %s280 = scalar_lea.vmem %s7, %s279
      %s281 = smul.u32 4, %s18
      %v282 = vld [vmem:[%s274] sm:$0xff]
      %v283 = vld [vmem:[%s274 + $0x8] sm:$0xff]
      %v284 = vld [vmem:[%s274 + $0x10] sm:$0xff]
      %v285 = vld [vmem:[%s274 + $0x18] sm:$0xff]
      %v286 = vld [vmem:[%s1] sm:$0xff]
      %v287 = vld [vmem:[%s1 + $0x8] sm:$0xff]
      %v288 = vld [vmem:[%s1 + $0x10] sm:$0xff]
      %v289 = vld [vmem:[%s1 + $0x18] sm:$0xff]
      %v290 = vld [vmem:[%s1 + $0x20] sm:$0xff]
      %v291 = vld [vmem:[%s1 + $0x28] sm:$0xff]
      %v292 = vld [vmem:[%s1 + $0x30] sm:$0xff]
      %v293 = vld [vmem:[%s1 + $0x38] sm:$0xff]
      %v294 = vld [vmem:[%s1 + $0x40] sm:$0xff]
      %v295 = vld [vmem:[%s1 + $0x48] sm:$0xff]
      %v296 = vld [vmem:[%s1 + $0x50] sm:$0xff]
      %v297 = vld [vmem:[%s1 + $0x58] sm:$0xff]
      %v298 = vld [vmem:[%s1 + $0x60] sm:$0xff]
      %v299 = vld [vmem:[%s1 + $0x68] sm:$0xff]
      %v300 = vld [vmem:[%s1 + $0x70] sm:$0xff]
      %v301 = vld [vmem:[%s1 + $0x78] sm:$0xff]
      %v302 = vld [vmem:[%s2] sm:$0x1]
      %v304 = vperm.slane %v302, 0
      %306 = vmatpush.msra.mxu0 %v301
      %307 = vmatpush.msra.mxu0 %v300
      %308 = vmatpush.msra.mxu0 %v299
      %309 = vmatpush.msra.mxu0 %v298
      %310 = vmatpush.msra.mxu0 %v297
      %311 = vmatpush.msra.mxu0 %v296
      %312 = vmatpush.msra.mxu0 %v295
      %313 = vmatpush.msra.mxu0 %v294
      %314 = vmatpush.msra.mxu0 %v293
      %315 = vmatpush.msra.mxu0 %v292
      %316 = vmatpush.msra.mxu0 %v291
      %317 = vmatpush.msra.mxu0 %v290
      %318 = vmatpush.msra.mxu0 %v289
      %319 = vmatpush.msra.mxu0 %v288
      %320 = vmatpush.msra.mxu0 %v287
      %321 = vmatpush.msra.mxu0 %v286
      %322 = vmatmul.f32.gmra.mxu0 %v282
      %v323 = vpop.f32.mrf.mxu0
      %v324 = vadd.f32 %v304, %v323
      %325 = vmatmul.f32.gmra.mxu0 %v283
      %v326 = vpop.f32.mrf.mxu0
      %v327 = vadd.f32 %v304, %v326
      %328 = vmatmul.f32.gmra.mxu0 %v284
      %v329 = vpop.f32.mrf.mxu0
      %v330 = vadd.f32 %v304, %v329
      %331 = vmatmul.f32.gmra.mxu0 %v285
      %v332 = vpop.f32.mrf.mxu0
      %v333 = vadd.f32 %v304, %v332
      %334 = vdwg.mxu0
      %v335 = vmax.f32 %v324, 0.0
      %v336 = vmax.f32 %v327, 0.0
      %v337 = vmax.f32 %v330, 0.0
      %v338 = vmax.f32 %v333, 0.0
      %v339 = vld [vmem:[%s3] sm:$0xff]
      %v340 = vld [vmem:[%s3 + $0x8] sm:$0xff]
      %v341 = vld [vmem:[%s3 + $0x10] sm:$0xff]
      %v342 = vld [vmem:[%s3 + $0x18] sm:$0xff]
      %v343 = vld [vmem:[%s3 + $0x20] sm:$0xff]
      %v344 = vld [vmem:[%s3 + $0x28] sm:$0xff]
      %v345 = vld [vmem:[%s3 + $0x30] sm:$0xff]
      %v346 = vld [vmem:[%s3 + $0x38] sm:$0xff]
      %v347 = vld [vmem:[%s3 + $0x40] sm:$0xff]
      %v348 = vld [vmem:[%s3 + $0x48] sm:$0xff]
      %v349 = vld [vmem:[%s3 + $0x50] sm:$0xff]
      %v350 = vld [vmem:[%s3 + $0x58] sm:$0xff]
      %v351 = vld [vmem:[%s3 + $0x60] sm:$0xff]
      %v352 = vld [vmem:[%s3 + $0x68] sm:$0xff]
      %v353 = vld [vmem:[%s3 + $0x70] sm:$0xff]
      %v354 = vld [vmem:[%s3 + $0x78] sm:$0xff]
      %v355 = vld [vmem:[%s4] sm:$0x1]
      %v357 = vperm.slane %v355, 0
      %359 = vmatpush.msra.mxu0 %v354
      %360 = vmatpush.msra.mxu0 %v353
      %361 = vmatpush.msra.mxu0 %v352
      %362 = vmatpush.msra.mxu0 %v351
      %363 = vmatpush.msra.mxu0 %v350
      %364 = vmatpush.msra.mxu0 %v349
      %365 = vmatpush.msra.mxu0 %v348
      %366 = vmatpush.msra.mxu0 %v347
      %367 = vmatpush.msra.mxu0 %v346
      %368 = vmatpush.msra.mxu0 %v345
      %369 = vmatpush.msra.mxu0 %v344
      %370 = vmatpush.msra.mxu0 %v343
      %371 = vmatpush.msra.mxu0 %v342
      %372 = vmatpush.msra.mxu0 %v341
      %373 = vmatpush.msra.mxu0 %v340
      %374 = vmatpush.msra.mxu0 %v339
      %375 = vmatmul.f32.gmra.mxu0 %v335
      %v376 = vpop.f32.mrf.mxu0
      %v377 = vadd.f32 %v357, %v376
      %378 = vmatmul.f32.gmra.mxu0 %v336
      %v379 = vpop.f32.mrf.mxu0
      %v380 = vadd.f32 %v357, %v379
      %381 = vmatmul.f32.gmra.mxu0 %v337
      %v382 = vpop.f32.mrf.mxu0
      %v383 = vadd.f32 %v357, %v382
      %384 = vmatmul.f32.gmra.mxu0 %v338
      %v385 = vpop.f32.mrf.mxu0
      %v386 = vadd.f32 %v357, %v385
      %387 = vdwg.mxu0
      %v388 = vmax.f32 %v377, 0.0
      %v389 = vmax.f32 %v380, 0.0
      %v390 = vmax.f32 %v383, 0.0
      %v391 = vmax.f32 %v386, 0.0
      %v392 = vld [vmem:[%s5] sm:$0xff]
      %v393 = vld [vmem:[%s5 + $0x8] sm:$0xff]
      %v394 = vld [vmem:[%s5 + $0x10] sm:$0xff]
      %v395 = vld [vmem:[%s5 + $0x18] sm:$0xff]
      %v396 = vld [vmem:[%s5 + $0x20] sm:$0xff]
      %v397 = vld [vmem:[%s5 + $0x28] sm:$0xff]
      %v398 = vld [vmem:[%s5 + $0x30] sm:$0xff]
      %v399 = vld [vmem:[%s5 + $0x38] sm:$0xff]
      %v400 = vld [vmem:[%s5 + $0x40] sm:$0xff]
      %v401 = vld [vmem:[%s5 + $0x48] sm:$0xff]
      %v402 = vld [vmem:[%s5 + $0x50] sm:$0xff]
      %v403 = vld [vmem:[%s5 + $0x58] sm:$0xff]
      %v404 = vld [vmem:[%s5 + $0x60] sm:$0xff]
      %v405 = vld [vmem:[%s5 + $0x68] sm:$0xff]
      %v406 = vld [vmem:[%s5 + $0x70] sm:$0xff]
      %v407 = vld [vmem:[%s5 + $0x78] sm:$0xff]
      %v408 = vld [vmem:[%s6] sm:$0x1]
      %v410 = vperm.slane %v408, 0
      %412 = vmatpush.msra.mxu0 %v407
      %413 = vmatpush.msra.mxu0 %v406
      %414 = vmatpush.msra.mxu0 %v405
      %415 = vmatpush.msra.mxu0 %v404
      %416 = vmatpush.msra.mxu0 %v403
      %417 = vmatpush.msra.mxu0 %v402
      %418 = vmatpush.msra.mxu0 %v401
      %419 = vmatpush.msra.mxu0 %v400
      %420 = vmatpush.msra.mxu0 %v399
      %421 = vmatpush.msra.mxu0 %v398
      %422 = vmatpush.msra.mxu0 %v397
      %423 = vmatpush.msra.mxu0 %v396
      %424 = vmatpush.msra.mxu0 %v395
      %425 = vmatpush.msra.mxu0 %v394
      %426 = vmatpush.msra.mxu0 %v393
      %427 = vmatpush.msra.mxu0 %v392
      %428 = vmatmul.f32.gmra.mxu0 %v388
      %v429 = vpop.f32.mrf.mxu0
      %v430 = vadd.f32 %v410, %v429
      %431 = vmatmul.f32.gmra.mxu0 %v389
      %v432 = vpop.f32.mrf.mxu0
      %v433 = vadd.f32 %v410, %v432
      %434 = vmatmul.f32.gmra.mxu0 %v390
      %v435 = vpop.f32.mrf.mxu0
      %v436 = vadd.f32 %v410, %v435
      %437 = vmatmul.f32.gmra.mxu0 %v391
      %v438 = vpop.f32.mrf.mxu0
      %v439 = vadd.f32 %v410, %v438
      %440 = vdwg.mxu0
      %441 = vst [vmem:[%s280] sm:$0xff] %v430
      %442 = vst [vmem:[%s280 + $0x8] sm:$0xff] %v433
      %443 = vst [vmem:[%s280 + $0x10] sm:$0xff] %v436
      %444 = vst [vmem:[%s280 + $0x18] sm:$0xff] %v439
      %s445 = smul.u32 4, %s18
      %p446 = scmp.lt.s32.totalorder %s445, 7
      %s447 = scalar_select %p446, %s445, 7
      %s448 = smul.addr %s447, 8
      %s449 = scalar_lea.vmem %s7, %s448
      // Predicated region
      $region49: #{mlp_forward.1} parent=47 // pred_check
        %p450 = pneg %p188
      $region50: #{mlp_forward.1} parent=47 // pred_check_branch
        %452 = sbr.rel (%p450) target = $region52
      $region51: #{mlp_forward.1} parent=47 // pred_region
        %s453 = smul.u32 4, %s18
      $region52: #{mlp_forward.1} parent=47 // pred_fallthru
        _
    $region48: #{mlp_forward.1} parent=5 // pred_fallthru
      _
    %p454 = scmp.le.s32.totalorder 2, %s13
    // Predicated region
    $region53: #{mlp_forward.1} parent=5 // pred_check
      %p455 = pneg %p454
    $region54: #{mlp_forward.1} parent=5 // pred_check_branch
      %457 = sbr.rel (%p455) target = $region56
    $region55: #{mlp_forward.1} parent=5 // pred_region
      %s458 = ssub.s32 %s13, 2
      // Predicated region
      $region57: #{mlp_forward.1} parent=55 // pred_check
        %p459 = pneg %p194
      $region58: #{mlp_forward.1} parent=55 // pred_check_branch
        %461 = sbr.rel (%p459) target = $region60
      $region59: #{mlp_forward.1} parent=55 // pred_region
        %s462 = smul.u32 4, %s19
        %p463 = scmp.lt.s32.totalorder %s462, 7
        %s464 = scalar_select %p463, %s462, 7
        %s465 = smul.addr %s464, 8
        %s466 = scalar_lea.vmem %s7, %s465
      $region60: #{mlp_forward.1} parent=55 // pred_fallthru
        _
    $region56: #{mlp_forward.1} parent=5 // pred_fallthru
      _
  $region6: #{mlp_forward.1} parent=0 // loop_footer
    %s17 = sadd.s32 1, %s13
  $region7: #{mlp_forward.1} parent=0 // loop_footer_branch
    %12 = sbr.rel target = $region3
  $region8: #{mlp_forward.1} parent=0 // loop_exit
    _

</llo_original>
